<compile_context>
chip_gen: v7x
topology: tpu7x:2x2x1
jax: 0.10.0
libtpu: 0.0.40
codegen_flags: <defaults>
</compile_context>

<pallas_src>
import jax
import jax.numpy as jnp
from jax.experimental import pallas as pl
from jax.experimental.pallas import tpu as pltpu


def _ceil_to(x, m):
    return -(-x // m) * m


def _cdiv(a, b):
    return -(-a // b)


def _min_sublane(itemsize):
    # Minimum second-to-last tile multiple by element width (f32:8, bf16:16, int8/fp8:32).
    return {4: 8, 2: 16, 1: 32}.get(int(itemsize), 8)


def _vmem_budget():
    """Generation-aware (working_set_budget_bytes, vmem_limit_cap_bytes)."""
    try:
        cap = int(getattr(pltpu.get_tpu_info(), "vmem_capacity_bytes", 0))
    except Exception:
        cap = 0
    if cap >= (100 << 20):        # v5e / v6e: 128 MiB physical VMEM
        return 56 << 20, 96 << 20
    # v7x (64 MiB per TC) or unknown: stay conservative, leave compiler headroom.
    return 22 << 20, 48 << 20


def _plan_tiles(M, L, K, a_sz, b_sz, o_sz, sublane, budget):
    """Pick tiles for C[M,K] = A[M,L] @ B[L,K].  Returns (tm, tn, tk, split_l)."""

    def fits(tm, tn, tk, acc=False):
        # Double-buffered A / B / C blocks (+ optional f32 accumulator scratch).
        ws = 2 * (tm * tk * a_sz + tk * tn * b_sz + tm * tn * o_sz)
        if acc:
            ws += tm * tn * 4
        return ws <= budget

    def largest_tm(tn, tk, acc=False):
        tm = min(1024, _ceil_to(M, sublane))
        while tm > sublane and not fits(tm, tn, tk, acc):
            tm = max(sublane, _ceil_to(tm // 2, sublane))
        return tm if fits(tm, tn, tk, acc) else None

    # Preferred: full-L contraction per step, B fully VMEM-resident (tn = K).
    tm = largest_tm(K, L)
    if tm is not None:
        return tm, K, L, False

    # Full-L but K split into lane-dense 128-multiple column tiles (B column
    # tiles get re-read per M tile; only reached when B alone is too large).
    for tn in (1024, 512, 256, 128):
        if tn > _ceil_to(K, 128):
            continue
        tm = largest_tm(tn, L)
        if tm is not None:
            return tm, tn, L, False

    # Fallback: tile the contraction dim too (very large L).  tk is a multiple
    # of 128 so A's lane-dim block stays legal and MXU passes stay full.
    for tk in (1024, 512, 256, 128):
        for tn in (K, 512, 256, 128):
            if tn != K and tn > _ceil_to(K, 128):
                continue
            tm = largest_tm(tn, tk, acc=True)
            if tm is not None:
                return tm, tn, tk, True

    # Minimal legal plan (practically unreachable).
    return sublane, 128, 128, True


def _mm_full_l_kernel(a_ref, b_ref, o_ref):
    # One full-L contraction per grid step; B block is VMEM-resident.
    o_ref[...] = jnp.dot(
        a_ref[...], b_ref[...], preferred_element_type=jnp.float32
    ).astype(o_ref.dtype)


def _mm_acc_inplace_kernel(a_ref, b_ref, o_ref):
    # f32 output: accumulate directly into the (VMEM-resident) output block.
    @pl.when(pl.program_id(2) == 0)
    def _():
        o_ref[...] = jnp.zeros_like(o_ref)

    o_ref[...] += jnp.dot(a_ref[...], b_ref[...], preferred_element_type=jnp.float32)


def _mm_acc_scratch_kernel(a_ref, b_ref, o_ref, acc_ref):
    # Non-f32 output: accumulate in an f32 scratch, cast on the last L step.
    @pl.when(pl.program_id(2) == 0)
    def _():
        acc_ref[...] = jnp.zeros_like(acc_ref)

    acc_ref[...] += jnp.dot(a_ref[...], b_ref[...], preferred_element_type=jnp.float32)

    @pl.when(pl.program_id(2) == pl.num_programs(2) - 1)
    def _():
        o_ref[...] = acc_ref[...].astype(o_ref.dtype)


def tensor_matrix_matmul(A, B):
    """C[b, i, j, k] = sum_l A[b, i, j, l] * B[l, k]  (einsum 'bijl,lk->bijk')."""
    b, i, j, l = A.shape
    l2, k = B.shape
    assert l == l2, "contraction dims must match"

    M = b * i * j
    out_dtype = jnp.result_type(A.dtype, B.dtype)
    a_sz = jnp.dtype(A.dtype).itemsize
    b_sz = jnp.dtype(B.dtype).itemsize
    o_sz = jnp.dtype(out_dtype).itemsize
    sublane = max(_min_sublane(a_sz), _min_sublane(o_sz))

    budget, vmem_cap_limit = _vmem_budget()
    A2d = A.reshape(M, l)

    tm, tn, tk, split_l = _plan_tiles(M, l, k, a_sz, b_sz, o_sz, sublane, budget)

    # v7x megacore occupancy: guarantee >= 2 "parallel" grid steps when possible
    # (no measurable cost on single-TC v5e/v6e).
    if _cdiv(M, tm) * _cdiv(k, tn) < 2 and M > sublane:
        tm = max(sublane, _ceil_to(_cdiv(M, 2), sublane))

    grid_m = _cdiv(M, tm)
    grid_n = _cdiv(k, tn)

    if not split_l:
        est = 2 * (tm * l * a_sz + l * tn * b_sz + tm * tn * o_sz)
        vmem_limit = int(min(max(est + (16 << 20), 32 << 20), vmem_cap_limit))
        out2d = pl.pallas_call(
            _mm_full_l_kernel,
            out_shape=jax.ShapeDtypeStruct((M, k), out_dtype),
            grid_spec=pltpu.PrefetchScalarGridSpec(
                num_scalar_prefetch=0,
                grid=(grid_m, grid_n),
                in_specs=[
                    pl.BlockSpec((tm, l), lambda mi, ni: (mi, 0)),
                    pl.BlockSpec((l, tn), lambda mi, ni: (0, ni)),
                ],
                out_specs=pl.BlockSpec((tm, tn), lambda mi, ni: (mi, ni)),
            ),
            compiler_params=pltpu.CompilerParams(
                dimension_semantics=("parallel", "parallel"),
                vmem_limit_bytes=vmem_limit,
            ),
        )(A2d, B)
        return out2d.reshape(b, i, j, k)

    # ---- Fallback: contraction dim tiled; zero-pad L so OOB never reaches the sum.
    L_pad = _ceil_to(l, tk)
    Bp = B
    if L_pad != l:
        A2d = jnp.pad(A2d, ((0, 0), (0, L_pad - l)))
        Bp = jnp.pad(B, ((0, L_pad - l), (0, 0)))
    grid_l = L_pad // tk

    acc_in_out = out_dtype == jnp.float32
    est = 2 * (tm * tk * a_sz + tk * tn * b_sz + tm * tn * o_sz)
    if not acc_in_out:
        est += tm * tn * 4
    vmem_limit = int(min(max(est + (16 << 20), 32 << 20), vmem_cap_limit))

    kernel = _mm_acc_inplace_kernel if acc_in_out else _mm_acc_scratch_kernel
    scratch = [] if acc_in_out else [pltpu.VMEM((tm, tn), jnp.float32)]

    out2d = pl.pallas_call(
        kernel,
        out_shape=jax.ShapeDtypeStruct((M, k), out_dtype),
        grid_spec=pltpu.PrefetchScalarGridSpec(
            num_scalar_prefetch=0,
            grid=(grid_m, grid_n, grid_l),
            in_specs=[
                pl.BlockSpec((tm, tk), lambda mi, ni, li: (mi, li)),
                pl.BlockSpec((tk, tn), lambda mi, ni, li: (li, ni)),
            ],
            out_specs=pl.BlockSpec((tm, tn), lambda mi, ni, li: (mi, ni)),
            scratch_shapes=scratch,
        ),
        compiler_params=pltpu.CompilerParams(
            dimension_semantics=("parallel", "parallel", "arbitrary"),
            vmem_limit_bytes=vmem_limit,
        ),
    )(A2d, Bp)
    return out2d.reshape(b, i, j, k)


if __name__ == "__main__":
    key = jax.random.PRNGKey(0)
    ka, kb, kc, kd = jax.random.split(key, 4)

    # Small shapes consistent with the module: A (b, i, j, l), B (l, k).
    b, i, j, l, k = 2, 4, 8, 32, 64
    A = jax.random.normal(ka, (b, i, j, l), dtype=jnp.float32)
    B = jax.random.normal(kb, (l, k), dtype=jnp.float32)

    C = jax.block_until_ready(tensor_matrix_matmul(A, B))
    C_ref = jnp.einsum("bijl,lk->bijk", A, B)
    assert C.shape == (b, i, j, k)
    assert jnp.allclose(C, C_ref, atol=1e-4, rtol=1e-4)

    # Ragged shapes: exercise the edge-block-masking path (no padding/slicing).
    b2, i2, j2, l2, k2 = 2, 3, 5, 24, 48
    A2 = jax.random.normal(kc, (b2, i2, j2, l2), dtype=jnp.float32)
    B2 = jax.random.normal(kd, (l2, k2), dtype=jnp.float32)

    C2 = jax.block_until_ready(tensor_matrix_matmul(A2, B2))
    C2_ref = jnp.einsum("bijl,lk->bijk", A2, B2)
    assert C2.shape == (b2, i2, j2, k2)
    assert jnp.allclose(C2, C2_ref, atol=1e-4, rtol=1e-4)

    print("KERNEL_OK")
</pallas_src>

<mosaic_0001>
module attributes {stable_mosaic.version = 11 : i64} {
  func.func @_mm_full_l_kernel(%arg0: i32, %arg1: i32, %arg2: memref<32x32xf32, #tpu.memory_space<vmem>>, %arg3: memref<32x64xf32, #tpu.memory_space<vmem>>, %arg4: memref<32x64xf32, #tpu.memory_space<vmem>>) attributes {dimension_semantics = [#tpu.dimension_semantics<parallel>, #tpu.dimension_semantics<parallel>], iteration_bounds = array<i64: 2, 1>, scalar_prefetch = 0 : i64, scratch_operands = 0 : i64, tpu.core_type = #tpu.core_type<tc>, window_params = [{transform_indices = @transform_0, window_bounds = array<i64: 32, 32>}, {transform_indices = @transform_1, window_bounds = array<i64: 32, 64>}, {transform_indices = @transform_2, window_bounds = array<i64: 32, 64>}]} {
    %c0 = arith.constant 0 : index
    %c0_0 = arith.constant 0 : index
    %0 = vector.load %arg2[%c0, %c0_0] : memref<32x32xf32, #tpu.memory_space<vmem>>, vector<32x32xf32>
    %c0_1 = arith.constant 0 : index
    %c0_2 = arith.constant 0 : index
    %1 = vector.load %arg3[%c0_1, %c0_2] : memref<32x64xf32, #tpu.memory_space<vmem>>, vector<32x64xf32>
    %cst = arith.constant dense<0.000000e+00> : vector<32x64xf32>
    %2 = tpu.matmul %0, %1, %cst {dimension_numbers = #tpu.dot_dimension_numbers<[1], [0], [0], [1], [0, 0, 1, 1], [], []>} : vector<32x32xf32>, vector<32x64xf32>, vector<32x64xf32> -> vector<32x64xf32>
    %c0_3 = arith.constant 0 : index
    %c0_4 = arith.constant 0 : index
    %3 = vector.load %arg4[%c0_3, %c0_4] : memref<32x64xf32, #tpu.memory_space<vmem>>, vector<32x64xf32>
    tpu.vector_store %arg4[%c0_3, %c0_4], %2 {strides = array<i32>} : memref<32x64xf32, #tpu.memory_space<vmem>>, vector<32x64xf32>,
    return
  }
  func.func @transform_0(%arg0: i32, %arg1: i32) -> (i32, i32) {
    %c0_i32 = arith.constant 0 : i32
    %c0_i32_0 = arith.constant 0 : i32
    return %arg0, %c0_i32 : i32, i32
  }
  func.func @transform_1(%arg0: i32, %arg1: i32) -> (i32, i32) {
    %c0_i32 = arith.constant 0 : i32
    %c0_i32_0 = arith.constant 0 : i32
    return %c0_i32, %arg1 : i32, i32
  }
  func.func @transform_2(%arg0: i32, %arg1: i32) -> (i32, i32) {
    %c0_i32 = arith.constant 0 : i32
    return %arg0, %arg1 : i32, i32
  }
}

</mosaic_0001>

<llo_original>
// kernel: tpu_custom_call.1
$region0: #{tpu_custom_call.1}
  #allocation0 [shape = 'u32[]', space=smem, size = 0x4, offset = 0x4, fixed_abs, tag = 'smem constant byte address 0x4 - core index']
  #allocation1 [shape = 'u32[144,128]{1,0:T(1,128)}', space=vmem, size = 0x12000, scoped, tag = 'internal scratch']
  %s0 = inlined_call_operand.vmem [shape: f32[64,32], index: 0, kind: input, shape index: {}]
  %s1 = inlined_call_operand.vmem [shape: f32[32,64], index: 1, kind: input, shape index: {}]
  %s2 = inlined_call_operand.hbm [shape: f32[64,64], index: 2, kind: output, shape index: {}]
  %s3 = sld [smem:[#allocation0]]
  $region41: #{tpu_custom_call.1} parent=0
    _
  %s5 = ssub.s32 1, %s3
  %s6 = scalar_select 0, %s5, %s3
  $region1: #{tpu_custom_call.1} parent=0
    #allocation2 [shape = 'u8[32768]{0}', space=vmem, size = 0x8000, scoped, tag = 'output window, operand 0']
    #allocation3 [shape = 's32[2]{0}', space=sflag, size = 0x8, scoped, tag = 'scoped memory for tpu_custom_call.1']
    %7 = vsyncpa [#allocation3], 0
    %s8 = scalar_lea.sflag [#allocation3], 1
    %9 = vsyncpa %s8, 0
    loop: start=0, step=1, limit=4
    $region2: #{tpu_custom_call.1} parent=1 // loop_pre_header
      _
    $region3: #{tpu_custom_call.1} parent=1 // loop_header
      %s11 = sphi 0, %s15
      %p12 = scmp.ge.s32.totalorder %s11, 4
      %s18 = sphi 0, %s30
      %s19 = sphi 0, %s26
      %s20 = sphi 0, %s18
      %s21 = sphi 0, %s19
      %s22 = sphi 0, %s20
      %s23 = sphi 0, %s21
      %s33 = sphi 0, %s35
      %s36 = sphi 0, %s33
      %s37 = sphi 0, %s36
      %s53 = sphi 0, %s37
      %s59 = sphi 0, %s61
      %s62 = sphi 0, %s59
      %s63 = sphi 0, %s62
      %s79 = sphi 0, %s63
      %s87 = sphi 0, %s89
      %s90 = sphi 0, %s87
      %s91 = sphi 0, %s90
      %s107 = sphi 0, %s91
    $region4: #{tpu_custom_call.1} parent=1 // loop_header_branch
      %14 = sbr.rel (%p12) target = $region8
    $region5: #{tpu_custom_call.1} parent=1 // loop_body
      %s16 = ssub.s32 %s11, 1
      %s17 = ssub.s32 %s11, 2
      %s24 = sadd.s32 1, %s19
      %p25 = scmp.ge.s32.totalorder %s24, 1
      %s26 = scalar_select %p25, 0, %s24
      %s27 = sadd.s32 1, %s18
      %s28 = scalar_select %p25, %s27, %s18
      %p29 = scmp.ge.s32.totalorder %s28, 2
      %s30 = scalar_select %p29, 0, %s28
      %s31 = ssub.s32 %s18, %s30
      %p32 = scmp.eq.s32.totalorder %s31, 0
      %s34 = sadd.s32 %s33, 1
      %s35 = scalar_select %p32, %s33, %s34
      %p38 = pneg %p32
      %p39 = scmp.eq.s32.totalorder %s11, 1
      %p40 = por %p38, %p39
      %p41 = scmp.ne.s32.totalorder %s33, %s36
      %p42 = scmp.eq.s32.totalorder %s11, 0
      %p43 = por %p41, %p42
      %p44 = scmp.ne.s32.totalorder %s33, %s36
      %p45 = scmp.eq.s32.totalorder %s16, 1
      %p46 = por %p44, %p45
      %p47 = scmp.ne.s32.totalorder %s36, %s37
      %p48 = scmp.eq.s32.totalorder %s16, 0
      %p49 = por %p47, %p48
      %p50 = scmp.ne.s32.totalorder %s36, %s37
      %p51 = scmp.eq.s32.totalorder %s17, 1
      %p52 = por %p50, %p51
      %p54 = scmp.ne.s32.totalorder %s37, %s53
      %p55 = scmp.eq.s32.totalorder %s17, 0
      %p56 = por %p54, %p55
      %s57 = ssub.s32 %s19, %s26
      %p58 = scmp.eq.s32.totalorder %s57, 0
      %s60 = sadd.s32 %s59, 1
      %s61 = scalar_select %p58, %s59, %s60
      %p64 = pneg %p58
      %p65 = scmp.eq.s32.totalorder %s11, 1
      %p66 = por %p64, %p65
      %p67 = scmp.ne.s32.totalorder %s59, %s62
      %p68 = scmp.eq.s32.totalorder %s11, 0
      %p69 = por %p67, %p68
      %p70 = scmp.ne.s32.totalorder %s59, %s62
      %p71 = scmp.eq.s32.totalorder %s16, 1
      %p72 = por %p70, %p71
      %p73 = scmp.ne.s32.totalorder %s62, %s63
      %p74 = scmp.eq.s32.totalorder %s16, 0
      %p75 = por %p73, %p74
      %p76 = scmp.ne.s32.totalorder %s62, %s63
      %p77 = scmp.eq.s32.totalorder %s17, 1
      %p78 = por %p76, %p77
      %p80 = scmp.ne.s32.totalorder %s63, %s79
      %p81 = scmp.eq.s32.totalorder %s17, 0
      %p82 = por %p80, %p81
      %s83 = ssub.s32 %s18, %s30
      %s84 = ssub.s32 %s19, %s26
      %s85 = sor.u32 %s83, %s84
      %p86 = scmp.eq.s32.totalorder %s85, 0
      %s88 = sadd.s32 %s87, 1
      %s89 = scalar_select %p86, %s87, %s88
      %p92 = pneg %p86
      %p93 = scmp.eq.s32.totalorder %s11, 1
      %p94 = por %p92, %p93
      %p95 = scmp.ne.s32.totalorder %s87, %s90
      %p96 = scmp.eq.s32.totalorder %s11, 0
      %p97 = por %p95, %p96
      %p98 = scmp.ne.s32.totalorder %s87, %s90
      %p99 = scmp.eq.s32.totalorder %s16, 1
      %p100 = por %p98, %p99
      %p101 = scmp.ne.s32.totalorder %s90, %s91
      %p102 = scmp.eq.s32.totalorder %s16, 0
      %p103 = por %p101, %p102
      %p104 = scmp.ne.s32.totalorder %s90, %s91
      %p105 = scmp.eq.s32.totalorder %s17, 1
      %p106 = por %p104, %p105
      %p108 = scmp.ne.s32.totalorder %s91, %s107
      %p109 = scmp.eq.s32.totalorder %s17, 0
      %p110 = por %p108, %p109
      %p111 = scmp.le.s32.totalorder 1, %s11
      %p112 = scmp.lt.s32.totalorder %s11, 3
      %p113 = pnand %p111, %p112
      %p114 = pneg %p113
      // Predicated region
      $region9: #{tpu_custom_call.1} parent=5 // pred_check
        _
      $region10: #{tpu_custom_call.1} parent=5 // pred_check_branch
        %116 = sbr.rel (%p113) target = $region12
      $region11: #{tpu_custom_call.1} parent=5 // pred_region
        %s117 = ssub.s32 %s11, 1
        // Predicated region
        $region13: #{tpu_custom_call.1} parent=11 // pred_check
          %p118 = pneg %p75
        $region14: #{tpu_custom_call.1} parent=11 // pred_check_branch
          %120 = sbr.rel (%p118) target = $region16
        $region15: #{tpu_custom_call.1} parent=11 // pred_region
          %p121 = scmp.lt.s32.totalorder %s21, 0
          %s122 = scalar_select %p121, %s21, 0
          %s123 = smul.addr %s122, 8
          %s124 = scalar_lea.vmem %s1, %s123
        $region16: #{tpu_custom_call.1} parent=11 // pred_fallthru
          _
      $region12: #{tpu_custom_call.1} parent=5 // pred_fallthru
        _
      %p125 = scmp.lt.s32.totalorder %s11, 2
      // Predicated region
      $region17: #{tpu_custom_call.1} parent=5 // pred_check
        %p126 = pneg %p125
      $region18: #{tpu_custom_call.1} parent=5 // pred_check_branch
        %128 = sbr.rel (%p126) target = $region20
      $region19: #{tpu_custom_call.1} parent=5 // pred_region
        // Predicated region
        $region21: #{tpu_custom_call.1} parent=19 // pred_check
          %p129 = pneg %p43
        $region22: #{tpu_custom_call.1} parent=19 // pred_check_branch
          %131 = sbr.rel (%p129) target = $region24
        $region23: #{tpu_custom_call.1} parent=19 // pred_region
          %s132 = smul.u32 4, %s18
          %p133 = scmp.lt.s32.totalorder %s132, 7
          %s134 = scalar_select %p133, %s132, 7
          %s135 = smul.addr %s134, 8
          %s136 = scalar_lea.vmem %s0, %s135
          %s137 = smul.u32 4, %s18
        $region24: #{tpu_custom_call.1} parent=19 // pred_fallthru
          _
      $region20: #{tpu_custom_call.1} parent=5 // pred_fallthru
        _
      %p138 = scmp.le.s32.totalorder 1, %s11
      %p139 = scmp.lt.s32.totalorder %s11, 3
      %p140 = pnand %p138, %p139
      %p141 = pneg %p140
      // Predicated region
      $region25: #{tpu_custom_call.1} parent=5 // pred_check
        _
      $region26: #{tpu_custom_call.1} parent=5 // pred_check_branch
        %143 = sbr.rel (%p140) target = $region28
      $region27: #{tpu_custom_call.1} parent=5 // pred_region
        %s144 = ssub.s32 %s11, 1
        %s145 = smul.u32 4, %s20
        %p146 = scmp.lt.s32.totalorder %s145, 7
        %s147 = scalar_select %p146, %s145, 7
        %s148 = smul.addr %s147, 8
        %s149 = scalar_lea.vmem %s0, %s148
        %p150 = pneg %p49
        %p151 = pneg %p46
        %p152 = scmp.lt.s32.totalorder %s21, 0
        %s153 = scalar_select %p152, %s21, 0
        %s154 = smul.addr %s153, 8
        %s155 = scalar_lea.vmem %s1, %s154
        %p156 = pneg %p75
        %p157 = pneg %p72
        %p158 = pneg %p103
        %p159 = pneg %p100
        %s160 = sand.u32 %s90, 1
        %s161 = scalar_lea.sflag [#allocation3], %s160
        %s162 = sand.u32 %s90, 1
        %s163 = smul.addr %s162, 32
        %s164 = scalar_lea.vmem [#allocation2], %s163
        %s165 = smul.u32 4, %s20
        %p166 = scmp.lt.s32.totalorder %s165, 7
        %s167 = scalar_select %p166, %s165, 7
        %s168 = smul.addr %s167, 8
        %s169 = scalar_lea.vmem %s0, %s168
        %s170 = smul.u32 4, %s20
        %p171 = scmp.lt.s32.totalorder %s21, 0
        %s172 = scalar_select %p171, %s21, 0
        %s173 = smul.addr %s172, 8
        %s174 = scalar_lea.vmem %s1, %s173
        %s175 = smul.u32 4, %s20
        %v176 = vld [vmem:[%s169] sm:$0xff]
        %v177 = vld [vmem:[%s169 + $0x8] sm:$0xff]
        %v178 = vld [vmem:[%s169 + $0x10] sm:$0xff]
        %v179 = vld [vmem:[%s169 + $0x18] sm:$0xff]
        %v180 = vld [vmem:[%s174] sm:$0xff]
        %v181 = vld [vmem:[%s174 + $0x8] sm:$0xff]
        %v182 = vld [vmem:[%s174 + $0x10] sm:$0xff]
        %v183 = vld [vmem:[%s174 + $0x18] sm:$0xff]
        %vm184 = vcmask 261120
        %v186 = vsel %vm184, %v176, 0
        %v189 = vsel %vm184, %v177, 0
        %v192 = vsel %vm184, %v178, 0
        %v195 = vsel %vm184, %v179, 0
        %197 = vmatprep.subr.mxu0 0.0
        %198 = vmatpush1.msra.mxu0 %v180
        %199 = vmatprep.subr.mxu0 0.0
        %200 = vmatpush1.msra.mxu0 %v181
        %201 = vmatprep.subr.mxu0 0.0
        %202 = vmatpush1.msra.mxu0 %v182
        %203 = vmatprep.subr.mxu0 0.0
        %204 = vmatpush1.msra.mxu0 %v183
        %205 = vmatprep.subr.mxu0 0.0
        %206 = vmatpush1.msra.mxu0 0.0
        %207 = vmatprep.subr.mxu0 0.0
        %208 = vmatpush1.msra.mxu0 0.0
        %209 = vmatprep.subr.mxu0 0.0
        %210 = vmatpush1.msra.mxu0 0.0
        %211 = vmatprep.subr.mxu0 0.0
        %212 = vmatpush1.msra.mxu0 0.0
        %213 = vmatprep.subr.mxu0 0.0
        %214 = vmatpush1.msra.mxu0 0.0
        %215 = vmatprep.subr.mxu0 0.0
        %216 = vmatpush1.msra.mxu0 0.0
        %217 = vmatprep.subr.mxu0 0.0
        %218 = vmatpush1.msra.mxu0 0.0
        %219 = vmatprep.subr.mxu0 0.0
        %220 = vmatpush1.msra.mxu0 0.0
        %221 = vmatprep.subr.mxu0 0.0
        %222 = vmatpush1.msra.mxu0 0.0
        %223 = vmatprep.subr.mxu0 0.0
        %224 = vmatpush1.msra.mxu0 0.0
        %225 = vmatprep.subr.mxu0 0.0
        %226 = vmatpush1.msra.mxu0 0.0
        %227 = vmatprep.subr.mxu0 0.0
        %228 = vmatpush1.msra.mxu0 0.0
        %229 = vmatprep.subr.mxu0 0.0
        %230 = vmatpush1.msra.mxu0 0.0
        %231 = vmatprep.subr.mxu0 0.0
        %232 = vmatpush1.msra.mxu0 0.0
        %233 = vmatprep.subr.mxu0 0.0
        %234 = vmatpush1.msra.mxu0 0.0
        %235 = vmatprep.subr.mxu0 0.0
        %236 = vmatpush1.msra.mxu0 0.0
        %237 = vmatprep.subr.mxu0 0.0
        %238 = vmatpush1.msra.mxu0 0.0
        %239 = vmatprep.subr.mxu0 0.0
        %240 = vmatpush1.msra.mxu0 0.0
        %241 = vmatprep.subr.mxu0 0.0
        %242 = vmatpush1.msra.mxu0 0.0
        %243 = vmatprep.subr.mxu0 0.0
        %244 = vmatpush1.msra.mxu0 0.0
        %245 = vmatprep.subr.mxu0 0.0
        %246 = vmatpush1.msra.mxu0 0.0
        %247 = vmatprep.subr.mxu0 0.0
        %248 = vmatpush1.msra.mxu0 0.0
        %249 = vmatprep.subr.mxu0 0.0
        %250 = vmatpush1.msra.mxu0 0.0
        %251 = vmatprep.subr.mxu0 0.0
        %252 = vmatpush1.msra.mxu0 0.0
        %253 = vmatprep.subr.mxu0 0.0
        %254 = vmatpush1.msra.mxu0 0.0
        %255 = vmatprep.subr.mxu0 0.0
        %256 = vmatpush1.msra.mxu0 0.0
        %257 = vmatprep.subr.mxu0 0.0
        %258 = vmatpush1.msra.mxu0 0.0
        %259 = vmatprep.subr.mxu0 0.0
        %260 = vmatpush1.msra.mxu0 0.0
        %261 = vmatprep.mubr.f32.mxu0 0.0
        %262 = vmatmul.mubr.f32.gmra.mrb[0].mxu0 %v186
        %v263 = vpop.f32.mrb[0].mxu0
        %v264 = vadd.f32 0.0, %v263
        %v265 = vpop.f32.mrb[0].mxu0
        %266 = vmatprep.mubr.f32.mxu0 0.0
        %267 = vmatmul.mubr.f32.gmra.mrb[0].mxu0 %v189
        %v268 = vpop.f32.mrb[0].mxu0
        %v269 = vadd.f32 0.0, %v268
        %v270 = vpop.f32.mrb[0].mxu0
        %271 = vmatprep.mubr.f32.mxu0 0.0
        %272 = vmatmul.mubr.f32.gmra.mrb[0].mxu0 %v192
        %v273 = vpop.f32.mrb[0].mxu0
        %v274 = vadd.f32 0.0, %v273
        %v275 = vpop.f32.mrb[0].mxu0
        %276 = vmatprep.mubr.f32.mxu0 0.0
        %277 = vmatmul.mubr.f32.gmra.mrb[0].mxu0 %v195
        %v278 = vpop.f32.mrb[0].mxu0
        %v279 = vadd.f32 0.0, %v278
        %v280 = vpop.f32.mrb[0].mxu0
        %281 = vdwg.mxu0
        %vm282 = vcmask 523264
        %283 = vst.msk [vmem:[%s164] sm:$0xff] %vm282, %v264
        %284 = vst.msk [vmem:[%s164 + $0x8] sm:$0xff] %vm282, %v269
        %285 = vst.msk [vmem:[%s164 + $0x10] sm:$0xff] %vm282, %v274
        %286 = vst.msk [vmem:[%s164 + $0x18] sm:$0xff] %vm282, %v279
        %s287 = sand.u32 %s90, 1
        %s288 = scalar_lea.sflag [#allocation3], %s287
        %s289 = sand.u32 %s90, 1
        %s290 = smul.addr %s289, 32
        %s291 = scalar_lea.vmem [#allocation2], %s290
        // Predicated region
        $region29: #{tpu_custom_call.1} parent=27 // pred_check
          %p292 = pneg %p100
        $region30: #{tpu_custom_call.1} parent=27 // pred_check_branch
          %294 = sbr.rel (%p292) target = $region32
        $region31: #{tpu_custom_call.1} parent=27 // pred_region
          %s295 = smul.u32 4, %s20
          %s297 = ssub.s32 512, 512
          %298 = vsyncadd %s288, %s297
          %s299 = sadd.s32 %s21, %s295
          %s300 = smul.addr %s299, 128
          %s301 = scalar_lea.hbm %s2, %s300
          %s302 = sshll.u32 %s291, 4
          %s303 = int_to_ptr.vmem [resolvable:$true] %s302
          %308 = dma.vmem_to_hbm [thread:$0]  %s303, 512, %s301, %s288, 128, 128, 8
        $region32: #{tpu_custom_call.1} parent=27 // pred_fallthru
          _
      $region28: #{tpu_custom_call.1} parent=5 // pred_fallthru
        _
      %p309 = scmp.le.s32.totalorder 2, %s11
      // Predicated region
      $region33: #{tpu_custom_call.1} parent=5 // pred_check
        %p310 = pneg %p309
      $region34: #{tpu_custom_call.1} parent=5 // pred_check_branch
        %312 = sbr.rel (%p310) target = $region36
      $region35: #{tpu_custom_call.1} parent=5 // pred_region
        %s313 = ssub.s32 %s11, 2
        // Predicated region
        $region37: #{tpu_custom_call.1} parent=35 // pred_check
          %p314 = pneg %p106
        $region38: #{tpu_custom_call.1} parent=35 // pred_check_branch
          %316 = sbr.rel (%p314) target = $region40
        $region39: #{tpu_custom_call.1} parent=35 // pred_region
          %s317 = sand.u32 %s91, 1
          %s318 = scalar_lea.sflag [#allocation3], %s317
          %s319 = sand.u32 %s91, 1
          %s320 = smul.addr %s319, 32
          %s321 = scalar_lea.vmem [#allocation2], %s320
          %322 = dma.done %s318, 512
        $region40: #{tpu_custom_call.1} parent=35 // pred_fallthru
          _
      $region36: #{tpu_custom_call.1} parent=5 // pred_fallthru
        _
    $region6: #{tpu_custom_call.1} parent=1 // loop_footer
      %s15 = sadd.s32 1, %s11
    $region7: #{tpu_custom_call.1} parent=1 // loop_footer_branch
      %10 = sbr.rel target = $region3
    $region8: #{tpu_custom_call.1} parent=1 // loop_exit
      _
    %323 = vsyncpa [#allocation3], 1
    %s324 = scalar_lea.sflag [#allocation3], 1
    %325 = vsyncpa %s324, 1

</llo_original>
